<compile_context>
chip_gen: v7x
topology: tpu7x:2x2x1
jax: 0.10.0
libtpu: 0.0.40
codegen_flags: <defaults>
</compile_context>

<pallas_src>
import jax
import jax.numpy as jnp
from jax.experimental import pallas as pl
from jax.experimental.pallas import tpu as pltpu

EPS = 1e-5  # nn.LayerNorm default


def _rtransformer_kernel(x_ref, gamma_ref, beta_ref, w_ref, b_ref, out_ref):
    x = x_ref[...]                 # (TB, E) f32
    gamma = gamma_ref[...]         # (1, E)  -- kept (1, E); VPU broadcasts for free
    beta = beta_ref[...]           # (1, E)

    def layer_norm(t):
        mu = jnp.mean(t, axis=-1, keepdims=True)          # (TB, 1)
        d = t - mu
        var = jnp.mean(d * d, axis=-1, keepdims=True)     # (TB, 1)
        a = jax.lax.rsqrt(var + EPS) * gamma               # (TB,1)*(1,E) lane/sublane bcast
        return d * a + beta                                 # 2 full-width VALU ops

    # ---- first LayerNorm ----
    ln = layer_norm(x)

    # ---- attention + out_proj + MLP-gate Linear, all folded ----
    # seq_len == 1 => softmax == 1 and eval dropout == identity, so
    # attn_output == v_proj(ln); the v/out/gate chain is purely linear and was
    # pre-folded on the host into one bf16 (E, E) weight and one f32 bias.
    g = jnp.dot(ln.astype(jnp.bfloat16), w_ref[...],
                preferred_element_type=jnp.float32) + b_ref[...]
    gate = jax.nn.sigmoid(g)                                # EUP

    # ---- second LayerNorm (same shared nn.LayerNorm params) ----
    out_ref[...] = layer_norm(gate).astype(out_ref.dtype)


def _pick_block_b(B, requested):
    """Largest batch tile that divides B, is a sublane multiple (or == B),
    and keeps at least 2 grid steps when B allows (pipelining + v7x 2 TCs)."""
    cap = min(requested, B)
    if B >= 16:
        cap = min(cap, B // 2)
    for tb in range(cap, 0, -1):
        if B % tb == 0 and (tb % 8 == 0 or tb == B):
            return tb
    return B


def rtransformer_forward(matrix, params, num_heads, *, block_b=512):
    B, E = matrix.shape
    assert E % num_heads == 0, "embed_dim must be divisible by num_heads"

    # Host-side folding of the three purely-linear projections (valid because
    # nothing nonlinear sits between them for seq_len == 1, eval mode).
    w_fused = (params["wv"] @ params["wo"] @ params["wg"]).astype(jnp.bfloat16)
    b_fused = ((params["bv"] @ params["wo"] + params["bo"]) @ params["wg"]
               + params["bg"]).astype(jnp.float32)

    tb = _pick_block_b(B, block_b)
    grid = (B // tb,)

    x_spec = pl.BlockSpec((tb, E), lambda i: (i, 0))

    def resident(a):
        # Constant index_map -> fetched once, resident across the batch grid.
        # TODO(synk): at large E on v7x, add pipeline_mode=pl.Buffered(1) here to
        # single-buffer the resident weight; at E=128 the double-buffered bf16
        # fused weight is only ~64 KiB so it is left at the default.
        return pl.BlockSpec(a.shape, lambda i: (0, 0))

    args = (matrix, params["gamma"], params["beta"], w_fused, b_fused)

    cost = pl.CostEstimate(
        flops=2 * B * E * E + 20 * B * E,            # single fused matmul + 2 LNs
        transcendentals=B * E + 2 * B,               # sigmoid + rsqrt
        bytes_accessed=4 * (2 * B * E + 4 * E) + 2 * E * E,  # f32 acts, bf16 weight
    )

    return pl.pallas_call(
        _rtransformer_kernel,
        out_shape=jax.ShapeDtypeStruct((B, E), jnp.float32),
        grid=grid,
        in_specs=[x_spec] + [resident(a) for a in args[1:]],
        out_specs=x_spec,
        compiler_params=pltpu.CompilerParams(
            dimension_semantics=("parallel",)),      # batch tiles shard on v7x's 2 TCs
        cost_estimate=cost,
    )(*args)


def reference_forward(matrix, params, num_heads):
    """Pure-JAX f32 reference mirroring the full PyTorch forward (eval mode),
    including the q/k/score/softmax/relation-bias path and the three separate
    projections that the kernel folds away."""
    B, E = matrix.shape
    H = num_heads
    Dh = E // H
    scaling = float(Dh) ** (-0.5)
    gamma = params["gamma"][0]
    beta = params["beta"][0]

    def ln_fn(t):
        mu = jnp.mean(t, axis=-1, keepdims=True)
        var = jnp.mean((t - mu) ** 2, axis=-1, keepdims=True)
        return (t - mu) / jnp.sqrt(var + EPS) * gamma + beta

    ln = ln_fn(matrix)
    q = ln @ params["wq"] + params["bq"][0]
    k = ln @ params["wk"] + params["bk"][0]
    v = ln @ params["wv"] + params["bv"][0]
    qh = q.reshape(B, 1, H, Dh).transpose(0, 2, 1, 3)   # (B,H,1,Dh)
    kh = k.reshape(B, 1, H, Dh).transpose(0, 2, 1, 3)
    vh = v.reshape(B, 1, H, Dh).transpose(0, 2, 1, 3)
    a1 = jnp.einsum("bhqd,bhkd->bhqk", qh, kh) * scaling
    a1 = a1 + params["rel_bias"][:, :, None, None]
    w = jax.nn.softmax(a1, axis=-1)
    attn = jnp.einsum("bhqk,bhkd->bhqd", w, vh)
    attn = attn.transpose(0, 2, 1, 3).reshape(B, E)
    out = attn @ params["wo"] + params["bo"][0]
    gate = jax.nn.sigmoid(out @ params["wg"] + params["bg"][0])
    return ln_fn(gate)


def init_params(key, total_games, embed_dim, num_heads):
    ks = jax.random.split(key, 6)
    scale = 0.05
    p = {
        # LayerNorm affine params (PyTorch init: ones / zeros)
        "gamma": jnp.ones((1, embed_dim), jnp.float32),
        "beta": jnp.zeros((1, embed_dim), jnp.float32),
        # Linear weights in (in, out) layout
        "wq": scale * jax.random.normal(ks[0], (embed_dim, embed_dim), jnp.float32),
        "bq": scale * jax.random.normal(ks[1], (1, embed_dim), jnp.float32),
        "wk": scale * jax.random.normal(ks[2], (embed_dim, embed_dim), jnp.float32),
        "bk": scale * jax.random.normal(ks[3], (1, embed_dim), jnp.float32),
        "wv": scale * jax.random.normal(ks[4], (embed_dim, embed_dim), jnp.float32),
        "bv": scale * jax.random.normal(ks[5], (1, embed_dim), jnp.float32),
        "wo": scale * jax.random.normal(jax.random.fold_in(key, 10),
                                        (embed_dim, embed_dim), jnp.float32),
        "bo": scale * jax.random.normal(jax.random.fold_in(key, 11),
                                        (1, embed_dim), jnp.float32),
        "wg": scale * jax.random.normal(jax.random.fold_in(key, 12),
                                        (embed_dim, embed_dim), jnp.float32),
        "bg": scale * jax.random.normal(jax.random.fold_in(key, 13),
                                        (1, embed_dim), jnp.float32),
        # relation bias: nn.Parameter(torch.zeros(total_games, num_heads, 1, 1))
        "rel_bias": jnp.zeros((total_games, num_heads), jnp.float32),
    }
    return p


if __name__ == "__main__":
    total_games = 256    # == batch size (relation bias broadcasts over batch)
    embed_dim = 128      # lane-dense -> unmasked stores, full MXU tiles
    num_heads = 8

    key = jax.random.PRNGKey(0)
    params = init_params(key, total_games, embed_dim, num_heads)
    matrix = jax.random.normal(jax.random.fold_in(key, 99),
                               (total_games, embed_dim), jnp.float32)

    out = rtransformer_forward(matrix, params, num_heads)
    out = jax.block_until_ready(out)

    ref = reference_forward(matrix, params, num_heads)
    assert out.shape == (total_games, embed_dim)
    # bf16 MXU operands + host-side weight folding change rounding vs the pure
    # f32 full-attention-path reference, and the final LayerNorm re-amplifies
    # the small gate variance, so the tolerance is loosened vs the old f32 check.
    assert jnp.allclose(out, ref, atol=3e-2, rtol=3e-2), "mismatch vs reference"

    print("KERNEL_OK")
</pallas_src>

<mosaic_0001>
module attributes {stable_mosaic.version = 11 : i64} {
  func.func @_rtransformer_kernel(%arg0: i32, %arg1: memref<128x128xf32, #tpu.memory_space<vmem>>, %arg2: memref<1x128xf32, #tpu.memory_space<vmem>>, %arg3: memref<1x128xf32, #tpu.memory_space<vmem>>, %arg4: memref<128x128xbf16, #tpu.memory_space<vmem>>, %arg5: memref<1x128xf32, #tpu.memory_space<vmem>>, %arg6: memref<128x128xf32, #tpu.memory_space<vmem>>) attributes {dimension_semantics = [#tpu.dimension_semantics<parallel>], iteration_bounds = array<i64: 2>, scalar_prefetch = 0 : i64, scratch_operands = 0 : i64, tpu.core_type = #tpu.core_type<tc>, window_params = [{transform_indices = @transform_0, window_bounds = array<i64: 128, 128>}, {pipeline_mode = #tpu.pipeline_mode<synchronous>, transform_indices = @transform_1, window_bounds = array<i64: 1, 128>}, {pipeline_mode = #tpu.pipeline_mode<synchronous>, transform_indices = @transform_2, window_bounds = array<i64: 1, 128>}, {pipeline_mode = #tpu.pipeline_mode<synchronous>, transform_indices = @transform_3, window_bounds = array<i64: 128, 128>}, {pipeline_mode = #tpu.pipeline_mode<synchronous>, transform_indices = @transform_4, window_bounds = array<i64: 1, 128>}, {transform_indices = @transform_5, window_bounds = array<i64: 128, 128>}]} {
    %c0 = arith.constant 0 : index
    %c0_0 = arith.constant 0 : index
    %0 = vector.load %arg1[%c0, %c0_0] : memref<128x128xf32, #tpu.memory_space<vmem>>, vector<128x128xf32>
    %c0_1 = arith.constant 0 : index
    %c0_2 = arith.constant 0 : index
    %1 = vector.load %arg2[%c0_1, %c0_2] : memref<1x128xf32, #tpu.memory_space<vmem>>, vector<1x128xf32>
    %c0_3 = arith.constant 0 : index
    %c0_4 = arith.constant 0 : index
    %2 = vector.load %arg3[%c0_3, %c0_4] : memref<1x128xf32, #tpu.memory_space<vmem>>, vector<1x128xf32>
    %cst = arith.constant dense<0.000000e+00> : vector<128xf32>
    %3 = vector.multi_reduction <add>, %0, %cst [1] : vector<128x128xf32> to vector<128xf32>
    %4 = vector.shape_cast %3 : vector<128xf32> to vector<128x1xf32>
    %cst_5 = arith.constant 1.280000e+02 : f32
    %5 = vector.broadcast %cst_5 : f32 to vector<128x1xf32>
    %6 = arith.divf %4, %5 : vector<128x1xf32>
    %7 = vector.broadcast %6 : vector<128x1xf32> to vector<128x128xf32>
    %8 = arith.subf %0, %7 : vector<128x128xf32>
    %9 = arith.mulf %8, %8 : vector<128x128xf32>
    %cst_6 = arith.constant dense<0.000000e+00> : vector<128xf32>
    %10 = vector.multi_reduction <add>, %9, %cst_6 [1] : vector<128x128xf32> to vector<128xf32>
    %11 = vector.shape_cast %10 : vector<128xf32> to vector<128x1xf32>
    %cst_7 = arith.constant 1.280000e+02 : f32
    %12 = vector.broadcast %cst_7 : f32 to vector<128x1xf32>
    %13 = arith.divf %11, %12 : vector<128x1xf32>
    %cst_8 = arith.constant 9.99999974E-6 : f32
    %14 = vector.broadcast %cst_8 : f32 to vector<128x1xf32>
    %15 = arith.addf %13, %14 : vector<128x1xf32>
    %16 = math.rsqrt %15 : vector<128x1xf32>
    %17 = vector.broadcast %16 : vector<128x1xf32> to vector<128x128xf32>
    %18 = vector.broadcast %1 : vector<1x128xf32> to vector<128x128xf32>
    %19 = arith.mulf %17, %18 : vector<128x128xf32>
    %20 = arith.mulf %8, %19 : vector<128x128xf32>
    %21 = vector.broadcast %2 : vector<1x128xf32> to vector<128x128xf32>
    %22 = arith.addf %20, %21 : vector<128x128xf32>
    %23 = arith.truncf %22 : vector<128x128xf32> to vector<128x128xbf16>
    %c0_9 = arith.constant 0 : index
    %c0_10 = arith.constant 0 : index
    %24 = vector.load %arg4[%c0_9, %c0_10] : memref<128x128xbf16, #tpu.memory_space<vmem>>, vector<128x128xbf16>
    %cst_11 = arith.constant dense<0.000000e+00> : vector<128x128xf32>
    %25 = tpu.matmul %23, %24, %cst_11 {dimension_numbers = #tpu.dot_dimension_numbers<[1], [0], [0], [1], [0, 0, 1, 1], [], []>} : vector<128x128xbf16>, vector<128x128xbf16>, vector<128x128xf32> -> vector<128x128xf32>
    %c0_12 = arith.constant 0 : index
    %c0_13 = arith.constant 0 : index
    %26 = vector.load %arg5[%c0_12, %c0_13] : memref<1x128xf32, #tpu.memory_space<vmem>>, vector<1x128xf32>
    %27 = vector.broadcast %26 : vector<1x128xf32> to vector<128x128xf32>
    %28 = arith.addf %25, %27 : vector<128x128xf32>
    %29 = arith.negf %28 : vector<128x128xf32>
    %30 = math.exp %29 : vector<128x128xf32>
    %cst_14 = arith.constant 1.000000e+00 : f32
    %31 = vector.broadcast %cst_14 : f32 to vector<128x128xf32>
    %32 = arith.addf %31, %30 : vector<128x128xf32>
    %33 = arith.divf %31, %32 : vector<128x128xf32>
    %cst_15 = arith.constant dense<0.000000e+00> : vector<128xf32>
    %34 = vector.multi_reduction <add>, %33, %cst_15 [1] : vector<128x128xf32> to vector<128xf32>
    %35 = vector.shape_cast %34 : vector<128xf32> to vector<128x1xf32>
    %cst_16 = arith.constant 1.280000e+02 : f32
    %36 = vector.broadcast %cst_16 : f32 to vector<128x1xf32>
    %37 = arith.divf %35, %36 : vector<128x1xf32>
    %38 = vector.broadcast %37 : vector<128x1xf32> to vector<128x128xf32>
    %39 = arith.subf %33, %38 : vector<128x128xf32>
    %40 = arith.mulf %39, %39 : vector<128x128xf32>
    %cst_17 = arith.constant dense<0.000000e+00> : vector<128xf32>
    %41 = vector.multi_reduction <add>, %40, %cst_17 [1] : vector<128x128xf32> to vector<128xf32>
    %42 = vector.shape_cast %41 : vector<128xf32> to vector<128x1xf32>
    %cst_18 = arith.constant 1.280000e+02 : f32
    %43 = vector.broadcast %cst_18 : f32 to vector<128x1xf32>
    %44 = arith.divf %42, %43 : vector<128x1xf32>
    %cst_19 = arith.constant 9.99999974E-6 : f32
    %45 = vector.broadcast %cst_19 : f32 to vector<128x1xf32>
    %46 = arith.addf %44, %45 : vector<128x1xf32>
    %47 = math.rsqrt %46 : vector<128x1xf32>
    %48 = vector.broadcast %47 : vector<128x1xf32> to vector<128x128xf32>
    %49 = vector.broadcast %1 : vector<1x128xf32> to vector<128x128xf32>
    %50 = arith.mulf %48, %49 : vector<128x128xf32>
    %51 = arith.mulf %39, %50 : vector<128x128xf32>
    %52 = vector.broadcast %2 : vector<1x128xf32> to vector<128x128xf32>
    %53 = arith.addf %51, %52 : vector<128x128xf32>
    %c0_20 = arith.constant 0 : index
    %c0_21 = arith.constant 0 : index
    %54 = vector.load %arg6[%c0_20, %c0_21] : memref<128x128xf32, #tpu.memory_space<vmem>>, vector<128x128xf32>
    tpu.vector_store %arg6[%c0_20, %c0_21], %53 {strides = array<i32>} : memref<128x128xf32, #tpu.memory_space<vmem>>, vector<128x128xf32>,
    return
  }
  func.func @transform_0(%arg0: i32) -> (i32, i32) {
    %c0_i32 = arith.constant 0 : i32
    %c0_i32_0 = arith.constant 0 : i32
    return %arg0, %c0_i32 : i32, i32
  }
  func.func @transform_1(%arg0: i32) -> (i32, i32) {
    %c0_i32 = arith.constant 0 : i32
    %c0_i32_0 = arith.constant 0 : i32
    %c0_i32_1 = arith.constant 0 : i32
    return %c0_i32, %c0_i32_0 : i32, i32
  }
  func.func @transform_2(%arg0: i32) -> (i32, i32) {
    %c0_i32 = arith.constant 0 : i32
    %c0_i32_0 = arith.constant 0 : i32
    %c0_i32_1 = arith.constant 0 : i32
    return %c0_i32, %c0_i32_0 : i32, i32
  }
  func.func @transform_3(%arg0: i32) -> (i32, i32) {
    %c0_i32 = arith.constant 0 : i32
    %c0_i32_0 = arith.constant 0 : i32
    %c0_i32_1 = arith.constant 0 : i32
    return %c0_i32, %c0_i32_0 : i32, i32
  }
  func.func @transform_4(%arg0: i32) -> (i32, i32) {
    %c0_i32 = arith.constant 0 : i32
    %c0_i32_0 = arith.constant 0 : i32
    %c0_i32_1 = arith.constant 0 : i32
    return %c0_i32, %c0_i32_0 : i32, i32
  }
  func.func @transform_5(%arg0: i32) -> (i32, i32) {
    %c0_i32 = arith.constant 0 : i32
    %c0_i32_0 = arith.constant 0 : i32
    return %arg0, %c0_i32 : i32, i32
  }
}

</mosaic_0001>

<llo_original>
// kernel: tpu_custom_call.1
$region0: #{tpu_custom_call.1}
  #allocation0 [shape = 'u32[]', space=smem, size = 0x4, offset = 0x4, fixed_abs, tag = 'smem constant byte address 0x4 - core index']
  #allocation1 [shape = 'u32[144,128]{1,0:T(1,128)}', space=vmem, size = 0x12000, scoped, tag = 'internal scratch']
  %s0 = inlined_call_operand.hbm [shape: f32[256,128], index: 0, kind: input, shape index: {}]
  %s1 = inlined_call_operand.vmem [shape: f32[1,128], index: 1, kind: input, shape index: {}]
  %s2 = inlined_call_operand.vmem [shape: f32[1,128], index: 2, kind: input, shape index: {}]
  %s3 = inlined_call_operand.hbm [shape: bf16[128,128], index: 3, kind: input, shape index: {}]
  %s4 = inlined_call_operand.vmem [shape: f32[1,128], index: 4, kind: input, shape index: {}]
  %s5 = inlined_call_operand.hbm [shape: f32[256,128], index: 5, kind: output, shape index: {}]
  %s6 = sld [smem:[#allocation0]]
  $region61: #{tpu_custom_call.1} parent=0
    _
  %s8 = ssub.s32 1, %s6
  %s9 = scalar_select 0, %s8, %s6
  $region1: #{tpu_custom_call.1} parent=0
    #allocation2 [shape = 'u8[131072]{0}', space=vmem, size = 0x20000, scoped, tag = 'input window, operand 0']
    #allocation3 [shape = 's32[2]{0}', space=sflag, size = 0x8, scoped, tag = 'scoped memory for tpu_custom_call.1']
    #allocation4 [shape = 's32[2]{0}', space=sflag, size = 0x8, scoped, tag = 'scoped memory for tpu_custom_call.1']
    #allocation5 [shape = 'u8[32768]{0}', space=vmem, size = 0x8000, scoped, tag = 'input window, operand 3, single buffered']
    #allocation6 [shape = 's32[1]{0}', space=sflag, size = 0x4, scoped, tag = 'scoped memory for tpu_custom_call.1']
    #allocation7 [shape = 'u8[131072]{0}', space=vmem, size = 0x20000, scoped, tag = 'output window, operand 0']
    %10 = vsyncpa [#allocation3], 0
    %s11 = scalar_lea.sflag [#allocation3], 1
    %12 = vsyncpa %s11, 0
    %13 = vsyncpa [#allocation6], 0
    %14 = vsyncpa [#allocation4], 0
    %s15 = scalar_lea.sflag [#allocation4], 1
    %16 = vsyncpa %s15, 0
    loop: start=0, step=1, limit=4
    $region2: #{tpu_custom_call.1} parent=1 // loop_pre_header
      _
    $region3: #{tpu_custom_call.1} parent=1 // loop_header
      %s18 = sphi 0, %s22
      %p19 = scmp.ge.s32.totalorder %s18, 4
      %s28 = sphi 0, %s30
      %s31 = sphi 0, %s28
      %s32 = sphi 0, %s31
      %s48 = sphi 0, %s32
      %s52 = sphi 0, %s52
      %s54 = sphi 0, %s52
      %s55 = sphi 0, %s54
      %s69 = sphi 0, %s55
      %s73 = sphi 0, %s73
      %s75 = sphi 0, %s73
      %s76 = sphi 0, %s75
      %s90 = sphi 0, %s76
      %s94 = sphi 0, %s94
      %s96 = sphi 0, %s94
      %s97 = sphi 0, %s96
      %s111 = sphi 0, %s97
      %s115 = sphi 0, %s115
      %s117 = sphi 0, %s115
      %s118 = sphi 0, %s117
      %s132 = sphi 0, %s118
      %s138 = sphi 0, %s140
      %s141 = sphi 0, %s138
      %s142 = sphi 0, %s141
      %s158 = sphi 0, %s142
    $region4: #{tpu_custom_call.1} parent=1 // loop_header_branch
      %21 = sbr.rel (%p19) target = $region8
    $region5: #{tpu_custom_call.1} parent=1 // loop_body
      %s23 = ssub.s32 %s18, 1
      %s24 = ssub.s32 %s18, 2
      %s25 = sadd.s32 %s18, 1
      %s26 = ssub.s32 %s18, %s25
      %p27 = scmp.eq.s32.totalorder %s26, 0
      %s29 = sadd.s32 %s28, 1
      %s30 = scalar_select %p27, %s28, %s29
      %p33 = pneg %p27
      %p34 = scmp.eq.s32.totalorder %s18, 1
      %p35 = por %p33, %p34
      %p36 = scmp.ne.s32.totalorder %s28, %s31
      %p37 = scmp.eq.s32.totalorder %s18, 0
      %p38 = por %p36, %p37
      %p39 = scmp.ne.s32.totalorder %s28, %s31
      %p40 = scmp.eq.s32.totalorder %s23, 1
      %p41 = por %p39, %p40
      %p42 = scmp.ne.s32.totalorder %s31, %s32
      %p43 = scmp.eq.s32.totalorder %s23, 0
      %p44 = por %p42, %p43
      %p45 = scmp.ne.s32.totalorder %s31, %s32
      %p46 = scmp.eq.s32.totalorder %s24, 1
      %p47 = por %p45, %p46
      %p49 = scmp.ne.s32.totalorder %s32, %s48
      %p50 = scmp.eq.s32.totalorder %s24, 0
      %p51 = por %p49, %p50
      %s53 = sadd.s32 %s52, 1
      %p56 = scmp.eq.s32.totalorder %s18, 1
      %p57 = scmp.ne.s32.totalorder %s52, %s54
      %p58 = scmp.eq.s32.totalorder %s18, 0
      %p59 = por %p57, %p58
      %p60 = scmp.ne.s32.totalorder %s52, %s54
      %p61 = scmp.eq.s32.totalorder %s23, 1
      %p62 = por %p60, %p61
      %p63 = scmp.ne.s32.totalorder %s54, %s55
      %p64 = scmp.eq.s32.totalorder %s23, 0
      %p65 = por %p63, %p64
      %p66 = scmp.ne.s32.totalorder %s54, %s55
      %p67 = scmp.eq.s32.totalorder %s24, 1
      %p68 = por %p66, %p67
      %p70 = scmp.ne.s32.totalorder %s55, %s69
      %p71 = scmp.eq.s32.totalorder %s24, 0
      %p72 = por %p70, %p71
      %s74 = sadd.s32 %s73, 1
      %p77 = scmp.eq.s32.totalorder %s18, 1
      %p78 = scmp.ne.s32.totalorder %s73, %s75
      %p79 = scmp.eq.s32.totalorder %s18, 0
      %p80 = por %p78, %p79
      %p81 = scmp.ne.s32.totalorder %s73, %s75
      %p82 = scmp.eq.s32.totalorder %s23, 1
      %p83 = por %p81, %p82
      %p84 = scmp.ne.s32.totalorder %s75, %s76
      %p85 = scmp.eq.s32.totalorder %s23, 0
      %p86 = por %p84, %p85
      %p87 = scmp.ne.s32.totalorder %s75, %s76
      %p88 = scmp.eq.s32.totalorder %s24, 1
      %p89 = por %p87, %p88
      %p91 = scmp.ne.s32.totalorder %s76, %s90
      %p92 = scmp.eq.s32.totalorder %s24, 0
      %p93 = por %p91, %p92
      %s95 = sadd.s32 %s94, 1
      %p98 = scmp.eq.s32.totalorder %s18, 1
      %p99 = scmp.ne.s32.totalorder %s94, %s96
      %p100 = scmp.eq.s32.totalorder %s18, 0
      %p101 = por %p99, %p100
      %p102 = scmp.ne.s32.totalorder %s94, %s96
      %p103 = scmp.eq.s32.totalorder %s23, 1
      %p104 = por %p102, %p103
      %p105 = scmp.ne.s32.totalorder %s96, %s97
      %p106 = scmp.eq.s32.totalorder %s23, 0
      %p107 = por %p105, %p106
      %p108 = scmp.ne.s32.totalorder %s96, %s97
      %p109 = scmp.eq.s32.totalorder %s24, 1
      %p110 = por %p108, %p109
      %p112 = scmp.ne.s32.totalorder %s97, %s111
      %p113 = scmp.eq.s32.totalorder %s24, 0
      %p114 = por %p112, %p113
      %s116 = sadd.s32 %s115, 1
      %p119 = scmp.eq.s32.totalorder %s18, 1
      %p120 = scmp.ne.s32.totalorder %s115, %s117
      %p121 = scmp.eq.s32.totalorder %s18, 0
      %p122 = por %p120, %p121
      %p123 = scmp.ne.s32.totalorder %s115, %s117
      %p124 = scmp.eq.s32.totalorder %s23, 1
      %p125 = por %p123, %p124
      %p126 = scmp.ne.s32.totalorder %s117, %s118
      %p127 = scmp.eq.s32.totalorder %s23, 0
      %p128 = por %p126, %p127
      %p129 = scmp.ne.s32.totalorder %s117, %s118
      %p130 = scmp.eq.s32.totalorder %s24, 1
      %p131 = por %p129, %p130
      %p133 = scmp.ne.s32.totalorder %s118, %s132
      %p134 = scmp.eq.s32.totalorder %s24, 0
      %p135 = por %p133, %p134
      %s136 = ssub.s32 %s18, %s25
      %p137 = scmp.eq.s32.totalorder %s136, 0
      %s139 = sadd.s32 %s138, 1
      %s140 = scalar_select %p137, %s138, %s139
      %p143 = pneg %p137
      %p144 = scmp.eq.s32.totalorder %s18, 1
      %p145 = por %p143, %p144
      %p146 = scmp.ne.s32.totalorder %s138, %s141
      %p147 = scmp.eq.s32.totalorder %s18, 0
      %p148 = por %p146, %p147
      %p149 = scmp.ne.s32.totalorder %s138, %s141
      %p150 = scmp.eq.s32.totalorder %s23, 1
      %p151 = por %p149, %p150
      %p152 = scmp.ne.s32.totalorder %s141, %s142
      %p153 = scmp.eq.s32.totalorder %s23, 0
      %p154 = por %p152, %p153
      %p155 = scmp.ne.s32.totalorder %s141, %s142
      %p156 = scmp.eq.s32.totalorder %s24, 1
      %p157 = por %p155, %p156
      %p159 = scmp.ne.s32.totalorder %s142, %s158
      %p160 = scmp.eq.s32.totalorder %s24, 0
      %p161 = por %p159, %p160
      %p162 = scmp.le.s32.totalorder 1, %s18
      %p163 = scmp.lt.s32.totalorder %s18, 3
      %p164 = pnand %p162, %p163
      %p165 = pneg %p164
      // Predicated region
      $region9: #{tpu_custom_call.1} parent=5 // pred_check
        _
      $region10: #{tpu_custom_call.1} parent=5 // pred_check_branch
        %167 = sbr.rel (%p164) target = $region12
      $region11: #{tpu_custom_call.1} parent=5 // pred_region
        %s168 = ssub.s32 %s18, 1
        // Predicated region
        $region13: #{tpu_custom_call.1} parent=11 // pred_check
          %p169 = pneg %p65
        $region14: #{tpu_custom_call.1} parent=11 // pred_check_branch
          %171 = sbr.rel (%p169) target = $region16
        $region15: #{tpu_custom_call.1} parent=11 // pred_region
          _
        $region16: #{tpu_custom_call.1} parent=11 // pred_fallthru
          _
        // Predicated region
        $region17: #{tpu_custom_call.1} parent=11 // pred_check
          %p172 = pneg %p86
        $region18: #{tpu_custom_call.1} parent=11 // pred_check_branch
          %174 = sbr.rel (%p172) target = $region20
        $region19: #{tpu_custom_call.1} parent=11 // pred_region
          _
        $region20: #{tpu_custom_call.1} parent=11 // pred_fallthru
          _
        // Predicated region
        $region21: #{tpu_custom_call.1} parent=11 // pred_check
          %p175 = pneg %p107
        $region22: #{tpu_custom_call.1} parent=11 // pred_check_branch
          %177 = sbr.rel (%p175) target = $region24
        $region23: #{tpu_custom_call.1} parent=11 // pred_region
          %s179 = ssub.s32 1024, 1024
          %180 = vsyncadd [#allocation6], %s179
          %s181 = sshll.u32 [#allocation5], 4
          %s182 = int_to_ptr.vmem [resolvable:$true] %s181
          %187 = dma.hbm_to_vmem [thread:$0]  %s3, 1024, %s182, [#allocation6], 64, 64, 4
        $region24: #{tpu_custom_call.1} parent=11 // pred_fallthru
          _
        // Predicated region
        $region25: #{tpu_custom_call.1} parent=11 // pred_check
          %p188 = pneg %p128
        $region26: #{tpu_custom_call.1} parent=11 // pred_check_branch
          %190 = sbr.rel (%p188) target = $region28
        $region27: #{tpu_custom_call.1} parent=11 // pred_region
          _
        $region28: #{tpu_custom_call.1} parent=11 // pred_fallthru
          _
      $region12: #{tpu_custom_call.1} parent=5 // pred_fallthru
        _
      %p191 = scmp.lt.s32.totalorder %s18, 2
      // Predicated region
      $region29: #{tpu_custom_call.1} parent=5 // pred_check
        %p192 = pneg %p191
      $region30: #{tpu_custom_call.1} parent=5 // pred_check_branch
        %194 = sbr.rel (%p192) target = $region32
      $region31: #{tpu_custom_call.1} parent=5 // pred_region
        // Predicated region
        $region33: #{tpu_custom_call.1} parent=31 // pred_check
          %p195 = pneg %p38
        $region34: #{tpu_custom_call.1} parent=31 // pred_check_branch
          %197 = sbr.rel (%p195) target = $region36
        $region35: #{tpu_custom_call.1} parent=31 // pred_region
          %s198 = sand.u32 %s28, 1
          %s199 = scalar_lea.sflag [#allocation3], %s198
          %s200 = sand.u32 %s28, 1
          %s201 = smul.addr %s200, 128
          %s202 = scalar_lea.vmem [#allocation2], %s201
          %s203 = smul.u32 16, %s18
          %s205 = ssub.s32 2048, 2048
          %206 = vsyncadd %s199, %s205
          %s207 = smul.addr %s203, 128
          %s208 = scalar_lea.hbm %s0, %s207
          %s209 = sshll.u32 %s202, 4
          %s210 = int_to_ptr.vmem [resolvable:$true] %s209
          %215 = dma.hbm_to_vmem [thread:$0]  %s208, 2048, %s210, %s199, 128, 128, 8
        $region36: #{tpu_custom_call.1} parent=31 // pred_fallthru
          _
      $region32: #{tpu_custom_call.1} parent=5 // pred_fallthru
        _
      %p216 = scmp.le.s32.totalorder 1, %s18
      %p217 = scmp.lt.s32.totalorder %s18, 3
      %p218 = pnand %p216, %p217
      %p219 = pneg %p218
      // Predicated region
      $region37: #{tpu_custom_call.1} parent=5 // pred_check
        _
      $region38: #{tpu_custom_call.1} parent=5 // pred_check_branch
        %221 = sbr.rel (%p218) target = $region40
      $region39: #{tpu_custom_call.1} parent=5 // pred_region
        %s222 = ssub.s32 %s18, 1
        %s223 = sand.u32 %s31, 1
        %s224 = scalar_lea.sflag [#allocation3], %s223
        %s225 = sand.u32 %s31, 1
        %s226 = smul.addr %s225, 128
        %s227 = scalar_lea.vmem [#allocation2], %s226
        // Predicated region
        $region41: #{tpu_custom_call.1} parent=39 // pred_check
          %p228 = pneg %p44
        $region42: #{tpu_custom_call.1} parent=39 // pred_check_branch
          %230 = sbr.rel (%p228) target = $region44
        $region43: #{tpu_custom_call.1} parent=39 // pred_region
          %231 = dma.done %s224, 2048
        $region44: #{tpu_custom_call.1} parent=39 // pred_fallthru
          _
        // Predicated region
        $region45: #{tpu_custom_call.1} parent=39 // pred_check
          %p232 = pneg %p107
        $region46: #{tpu_custom_call.1} parent=39 // pred_check_branch
          %234 = sbr.rel (%p232) target = $region48
        $region47: #{tpu_custom_call.1} parent=39 // pred_region
          %235 = dma.done [#allocation6], 1024
        $region48: #{tpu_custom_call.1} parent=39 // pred_fallthru
          _
        %s236 = sand.u32 %s31, 1
        %s237 = scalar_lea.sflag [#allocation3], %s236
        %s238 = sand.u32 %s31, 1
        %s239 = smul.addr %s238, 128
        %s240 = scalar_lea.vmem [#allocation2], %s239
        %p241 = pneg %p44
        %p242 = pneg %p41
        %p243 = pneg %p65
        %p244 = pneg %p62
        %p245 = pneg %p86
        %p246 = pneg %p83
        %p247 = pneg %p107
        %p248 = pneg %p104
        %p249 = pneg %p128
        %p250 = pneg %p125
        %p251 = pneg %p154
        %p252 = pneg %p151
        %s253 = sand.u32 %s141, 1
        %s254 = scalar_lea.sflag [#allocation4], %s253
        %s255 = sand.u32 %s141, 1
        %s256 = smul.addr %s255, 128
        %s257 = scalar_lea.vmem [#allocation7], %s256
        %s258 = smul.u32 16, %s23
        %s259 = smul.u32 16, %s23
        %v261 = vld [vmem:[%s227] sm:$0xff]
        %v262 = vld [vmem:[%s227 + $0x8] sm:$0xff]
        %v263 = vld [vmem:[%s227 + $0x10] sm:$0xff]
        %v264 = vld [vmem:[%s227 + $0x18] sm:$0xff]
        %v265 = vld [vmem:[%s227 + $0x20] sm:$0xff]
        %v266 = vld [vmem:[%s227 + $0x28] sm:$0xff]
        %v267 = vld [vmem:[%s227 + $0x30] sm:$0xff]
        %v268 = vld [vmem:[%s227 + $0x38] sm:$0xff]
        %v269 = vld [vmem:[%s227 + $0x40] sm:$0xff]
        %v270 = vld [vmem:[%s227 + $0x48] sm:$0xff]
        %v271 = vld [vmem:[%s227 + $0x50] sm:$0xff]
        %v272 = vld [vmem:[%s227 + $0x58] sm:$0xff]
        %v273 = vld [vmem:[%s227 + $0x60] sm:$0xff]
        %v274 = vld [vmem:[%s227 + $0x68] sm:$0xff]
        %v275 = vld [vmem:[%s227 + $0x70] sm:$0xff]
        %v276 = vld [vmem:[%s227 + $0x78] sm:$0xff]
        %v277 = vld [vmem:[%s1] sm:$0x1]
        %v278 = vld [vmem:[%s2] sm:$0x1]
        %279 = vadd.xlane.f32.xlu0 %v261
        %v280 = vpop.xlane.xlu0 %279
        %281 = vadd.xlane.f32.xlu0 %v262
        %v282 = vpop.xlane.xlu0 %281
        %283 = vadd.xlane.f32.xlu0 %v263
        %v284 = vpop.xlane.xlu0 %283
        %285 = vadd.xlane.f32.xlu0 %v264
        %v286 = vpop.xlane.xlu0 %285
        %287 = vadd.xlane.f32.xlu0 %v265
        %v288 = vpop.xlane.xlu0 %287
        %289 = vadd.xlane.f32.xlu0 %v266
        %v290 = vpop.xlane.xlu0 %289
        %291 = vadd.xlane.f32.xlu0 %v267
        %v292 = vpop.xlane.xlu0 %291
        %293 = vadd.xlane.f32.xlu0 %v268
        %v294 = vpop.xlane.xlu0 %293
        %295 = vadd.xlane.f32.xlu0 %v269
        %v296 = vpop.xlane.xlu0 %295
        %297 = vadd.xlane.f32.xlu0 %v270
        %v298 = vpop.xlane.xlu0 %297
        %299 = vadd.xlane.f32.xlu0 %v271
        %v300 = vpop.xlane.xlu0 %299
        %301 = vadd.xlane.f32.xlu0 %v272
        %v302 = vpop.xlane.xlu0 %301
        %303 = vadd.xlane.f32.xlu0 %v273
        %v304 = vpop.xlane.xlu0 %303
        %305 = vadd.xlane.f32.xlu0 %v274
        %v306 = vpop.xlane.xlu0 %305
        %307 = vadd.xlane.f32.xlu0 %v275
        %v308 = vpop.xlane.xlu0 %307
        %309 = vadd.xlane.f32.xlu0 %v276
        %v310 = vpop.xlane.xlu0 %309
        %v311 = vrcp.pop 128.0
        %v312 = vmul.f32 %v280, %v311
        %v313 = vmul.f32 %v282, %v311
        %v314 = vmul.f32 %v284, %v311
        %v315 = vmul.f32 %v286, %v311
        %v316 = vmul.f32 %v288, %v311
        %v317 = vmul.f32 %v290, %v311
        %v318 = vmul.f32 %v292, %v311
        %v319 = vmul.f32 %v294, %v311
        %v320 = vmul.f32 %v296, %v311
        %v321 = vmul.f32 %v298, %v311
        %v322 = vmul.f32 %v300, %v311
        %v323 = vmul.f32 %v302, %v311
        %v324 = vmul.f32 %v304, %v311
        %v325 = vmul.f32 %v306, %v311
        %v326 = vmul.f32 %v308, %v311
        %v327 = vmul.f32 %v310, %v311
        %v328 = vsub.f32 %v261, %v312
        %v329 = vsub.f32 %v262, %v313
        %v330 = vsub.f32 %v263, %v314
        %v331 = vsub.f32 %v264, %v315
        %v332 = vsub.f32 %v265, %v316
        %v333 = vsub.f32 %v266, %v317
        %v334 = vsub.f32 %v267, %v318
        %v335 = vsub.f32 %v268, %v319
        %v336 = vsub.f32 %v269, %v320
        %v337 = vsub.f32 %v270, %v321
        %v338 = vsub.f32 %v271, %v322
        %v339 = vsub.f32 %v272, %v323
        %v340 = vsub.f32 %v273, %v324
        %v341 = vsub.f32 %v274, %v325
        %v342 = vsub.f32 %v275, %v326
        %v343 = vsub.f32 %v276, %v327
        %v344 = vmul.f32 %v328, %v328
        %v345 = vmul.f32 %v329, %v329
        %v346 = vmul.f32 %v330, %v330
        %v347 = vmul.f32 %v331, %v331
        %v348 = vmul.f32 %v332, %v332
        %v349 = vmul.f32 %v333, %v333
        %v350 = vmul.f32 %v334, %v334
        %v351 = vmul.f32 %v335, %v335
        %v352 = vmul.f32 %v336, %v336
        %v353 = vmul.f32 %v337, %v337
        %v354 = vmul.f32 %v338, %v338
        %v355 = vmul.f32 %v339, %v339
        %v356 = vmul.f32 %v340, %v340
        %v357 = vmul.f32 %v341, %v341
        %v358 = vmul.f32 %v342, %v342
        %v359 = vmul.f32 %v343, %v343
        %360 = vadd.xlane.f32.xlu0 %v344
        %v361 = vpop.xlane.xlu0 %360
        %362 = vadd.xlane.f32.xlu0 %v345
        %v363 = vpop.xlane.xlu0 %362
        %364 = vadd.xlane.f32.xlu0 %v346
        %v365 = vpop.xlane.xlu0 %364
        %366 = vadd.xlane.f32.xlu0 %v347
        %v367 = vpop.xlane.xlu0 %366
        %368 = vadd.xlane.f32.xlu0 %v348
        %v369 = vpop.xlane.xlu0 %368
        %370 = vadd.xlane.f32.xlu0 %v349
        %v371 = vpop.xlane.xlu0 %370
        %372 = vadd.xlane.f32.xlu0 %v350
        %v373 = vpop.xlane.xlu0 %372
        %374 = vadd.xlane.f32.xlu0 %v351
        %v375 = vpop.xlane.xlu0 %374
        %376 = vadd.xlane.f32.xlu0 %v352
        %v377 = vpop.xlane.xlu0 %376
        %378 = vadd.xlane.f32.xlu0 %v353
        %v379 = vpop.xlane.xlu0 %378
        %380 = vadd.xlane.f32.xlu0 %v354
        %v381 = vpop.xlane.xlu0 %380
        %382 = vadd.xlane.f32.xlu0 %v355
        %v383 = vpop.xlane.xlu0 %382
        %384 = vadd.xlane.f32.xlu0 %v356
        %v385 = vpop.xlane.xlu0 %384
        %386 = vadd.xlane.f32.xlu0 %v357
        %v387 = vpop.xlane.xlu0 %386
        %388 = vadd.xlane.f32.xlu0 %v358
        %v389 = vpop.xlane.xlu0 %388
        %390 = vadd.xlane.f32.xlu0 %v359
        %v391 = vpop.xlane.xlu0 %390
        %v392 = vmul.f32 %v361, %v311
        %v393 = vmul.f32 %v363, %v311
        %v394 = vmul.f32 %v365, %v311
        %v395 = vmul.f32 %v367, %v311
        %v396 = vmul.f32 %v369, %v311
        %v397 = vmul.f32 %v371, %v311
        %v398 = vmul.f32 %v373, %v311
        %v399 = vmul.f32 %v375, %v311
        %v400 = vmul.f32 %v377, %v311
        %v401 = vmul.f32 %v379, %v311
        %v402 = vmul.f32 %v381, %v311
        %v403 = vmul.f32 %v383, %v311
        %v404 = vmul.f32 %v385, %v311
        %v405 = vmul.f32 %v387, %v311
        %v406 = vmul.f32 %v389, %v311
        %v407 = vmul.f32 %v391, %v311
        %v408 = vadd.f32 %v392, 1e-05
        %v409 = vadd.f32 %v393, 1e-05
        %v410 = vadd.f32 %v394, 1e-05
        %v411 = vadd.f32 %v395, 1e-05
        %v412 = vadd.f32 %v396, 1e-05
        %v413 = vadd.f32 %v397, 1e-05
        %v414 = vadd.f32 %v398, 1e-05
        %v415 = vadd.f32 %v399, 1e-05
        %v416 = vadd.f32 %v400, 1e-05
        %v417 = vadd.f32 %v401, 1e-05
        %v418 = vadd.f32 %v402, 1e-05
        %v419 = vadd.f32 %v403, 1e-05
        %v420 = vadd.f32 %v404, 1e-05
        %v421 = vadd.f32 %v405, 1e-05
        %v422 = vadd.f32 %v406, 1e-05
        %v423 = vadd.f32 %v407, 1e-05
        %v424 = vrsqrt.pop %v408
        %v425 = vrsqrt.pop %v409
        %v426 = vrsqrt.pop %v410
        %v427 = vrsqrt.pop %v411
        %v428 = vrsqrt.pop %v412
        %v429 = vrsqrt.pop %v413
        %v430 = vrsqrt.pop %v414
        %v431 = vrsqrt.pop %v415
        %v432 = vrsqrt.pop %v416
        %v433 = vrsqrt.pop %v417
        %v434 = vrsqrt.pop %v418
        %v435 = vrsqrt.pop %v419
        %v436 = vrsqrt.pop %v420
        %v437 = vrsqrt.pop %v421
        %v438 = vrsqrt.pop %v422
        %v439 = vrsqrt.pop %v423
        %v441 = vlaneseq
        %v442 = vshrl.u32 %v441, 7
        %v443 = vsub.s32 0, %v442
        %v444 = vrot.slane %v277, %v443
        %v446 = vmul.f32 %v424, %v444
        %v447 = vmul.f32 %v425, %v444
        %v448 = vmul.f32 %v426, %v444
        %v449 = vmul.f32 %v427, %v444
        %v450 = vmul.f32 %v428, %v444
        %v451 = vmul.f32 %v429, %v444
        %v452 = vmul.f32 %v430, %v444
        %v453 = vmul.f32 %v431, %v444
        %v454 = vmul.f32 %v432, %v444
        %v455 = vmul.f32 %v433, %v444
        %v456 = vmul.f32 %v434, %v444
        %v457 = vmul.f32 %v435, %v444
        %v458 = vmul.f32 %v436, %v444
        %v459 = vmul.f32 %v437, %v444
        %v460 = vmul.f32 %v438, %v444
        %v461 = vmul.f32 %v439, %v444
        %v462 = vmul.f32 %v328, %v446
        %v463 = vmul.f32 %v329, %v447
        %v464 = vmul.f32 %v330, %v448
        %v465 = vmul.f32 %v331, %v449
        %v466 = vmul.f32 %v332, %v450
        %v467 = vmul.f32 %v333, %v451
        %v468 = vmul.f32 %v334, %v452
        %v469 = vmul.f32 %v335, %v453
        %v470 = vmul.f32 %v336, %v454
        %v471 = vmul.f32 %v337, %v455
        %v472 = vmul.f32 %v338, %v456
        %v473 = vmul.f32 %v339, %v457
        %v474 = vmul.f32 %v340, %v458
        %v475 = vmul.f32 %v341, %v459
        %v476 = vmul.f32 %v342, %v460
        %v477 = vmul.f32 %v343, %v461
        %v479 = vlaneseq
        %v480 = vshrl.u32 %v479, 7
        %v481 = vsub.s32 0, %v480
        %v482 = vrot.slane %v278, %v481
        %v484 = vadd.f32 %v462, %v482
        %v485 = vadd.f32 %v463, %v482
        %v486 = vadd.f32 %v464, %v482
        %v487 = vadd.f32 %v465, %v482
        %v488 = vadd.f32 %v466, %v482
        %v489 = vadd.f32 %v467, %v482
        %v490 = vadd.f32 %v468, %v482
        %v491 = vadd.f32 %v469, %v482
        %v492 = vadd.f32 %v470, %v482
        %v493 = vadd.f32 %v471, %v482
        %v494 = vadd.f32 %v472, %v482
        %v495 = vadd.f32 %v473, %v482
        %v496 = vadd.f32 %v474, %v482
        %v497 = vadd.f32 %v475, %v482
        %v498 = vadd.f32 %v476, %v482
        %v499 = vadd.f32 %v477, %v482
        %v500 = vpack.c.bf16 %v485, %v484
        %v501 = vpack.c.bf16 %v487, %v486
        %v502 = vpack.c.bf16 %v489, %v488
        %v503 = vpack.c.bf16 %v491, %v490
        %v504 = vpack.c.bf16 %v493, %v492
        %v505 = vpack.c.bf16 %v495, %v494
        %v506 = vpack.c.bf16 %v497, %v496
        %v507 = vpack.c.bf16 %v499, %v498
        %v508 = vld [vmem:[#allocation5] sm:$0xf]
        %v509 = vld [vmem:[#allocation5 + $0x4] sm:$0xf]
        %v510 = vld [vmem:[#allocation5 + $0x8] sm:$0xf]
        %v511 = vld [vmem:[#allocation5 + $0xc] sm:$0xf]
        %v512 = vld [vmem:[#allocation5 + $0x10] sm:$0xf]
        %v513 = vld [vmem:[#allocation5 + $0x14] sm:$0xf]
        %v514 = vld [vmem:[#allocation5 + $0x18] sm:$0xf]
        %v515 = vld [vmem:[#allocation5 + $0x1c] sm:$0xf]
        %v516 = vld [vmem:[#allocation5 + $0x20] sm:$0xf]
        %v517 = vld [vmem:[#allocation5 + $0x24] sm:$0xf]
        %v518 = vld [vmem:[#allocation5 + $0x28] sm:$0xf]
        %v519 = vld [vmem:[#allocation5 + $0x2c] sm:$0xf]
        %v520 = vld [vmem:[#allocation5 + $0x30] sm:$0xf]
        %v521 = vld [vmem:[#allocation5 + $0x34] sm:$0xf]
        %v522 = vld [vmem:[#allocation5 + $0x38] sm:$0xf]
        %v523 = vld [vmem:[#allocation5 + $0x3c] sm:$0xf]
        %v524 = vld [vmem:[%s4] sm:$0x1]
        %v526 = vlaneseq
        %v527 = vshrl.u32 %v526, 7
        %v528 = vsub.s32 0, %v527
        %v529 = vrot.slane %v524, %v528
        %v547 = vunpack.c.l.b16 %v508
        %v548 = vunpack.c.l.b16 %v509
        %v549 = vunpack.c.l.b16 %v510
        %v550 = vunpack.c.l.b16 %v511
        %v551 = vunpack.c.l.b16 %v512
        %v552 = vunpack.c.l.b16 %v513
        %v553 = vunpack.c.l.b16 %v514
        %v554 = vunpack.c.l.b16 %v515
        %v555 = vunpack.c.l.b16 %v516
        %v556 = vunpack.c.l.b16 %v517
        %v557 = vunpack.c.l.b16 %v518
        %v558 = vunpack.c.l.b16 %v519
        %v559 = vunpack.c.l.b16 %v520
        %v560 = vunpack.c.l.b16 %v521
        %v561 = vunpack.c.l.b16 %v522
        %v562 = vunpack.c.l.b16 %v523
        %v563 = vpack.c.b16 %v548, %v547
        %v564 = vpack.c.b16 %v550, %v549
        %v565 = vpack.c.b16 %v552, %v551
        %v566 = vpack.c.b16 %v554, %v553
        %v567 = vpack.c.b16 %v556, %v555
        %v568 = vpack.c.b16 %v558, %v557
        %v569 = vpack.c.b16 %v560, %v559
        %v570 = vpack.c.b16 %v562, %v561
        %579 = vmatprep.subr.bf16.mxu0 0
        %580 = vmatpush1.bf16.msra.mxu0 %v563
        %581 = vmatprep.subr.bf16.mxu0 0
        %582 = vmatpush1.bf16.msra.mxu0 %v564
        %583 = vmatprep.subr.bf16.mxu0 0
        %584 = vmatpush1.bf16.msra.mxu0 %v565
        %585 = vmatprep.subr.bf16.mxu0 0
        %586 = vmatpush1.bf16.msra.mxu0 %v566
        %587 = vmatprep.subr.bf16.mxu0 0
        %588 = vmatpush1.bf16.msra.mxu0 %v567
        %589 = vmatprep.subr.bf16.mxu0 0
        %590 = vmatpush1.bf16.msra.mxu0 %v568
        %591 = vmatprep.subr.bf16.mxu0 0
        %592 = vmatpush1.bf16.msra.mxu0 %v569
        %593 = vmatprep.subr.bf16.mxu0 0
        %594 = vmatpush1.bf16.msra.mxu0 %v570
        %595 = vmatprep.subr.bf16.mxu0 0
        %596 = vmatpush1.bf16.msra.mxu0 0
        %597 = vmatprep.subr.bf16.mxu0 0
        %598 = vmatpush1.bf16.msra.mxu0 0
        %599 = vmatprep.subr.bf16.mxu0 0
        %600 = vmatpush1.bf16.msra.mxu0 0
        %601 = vmatprep.subr.bf16.mxu0 0
        %602 = vmatpush1.bf16.msra.mxu0 0
        %603 = vmatprep.subr.bf16.mxu0 0
        %604 = vmatpush1.bf16.msra.mxu0 0
        %605 = vmatprep.subr.bf16.mxu0 0
        %606 = vmatpush1.bf16.msra.mxu0 0
        %607 = vmatprep.subr.bf16.mxu0 0
        %608 = vmatpush1.bf16.msra.mxu0 0
        %609 = vmatprep.subr.bf16.mxu0 0
        %610 = vmatpush1.bf16.msra.mxu0 0
        %611 = vmatprep.mubr.bf16.mxu0 0
        %612 = vmatmul.mubr.bf16.gmra.mrb[0].mxu0 %v500
        %v613 = vpop.f32.mrb[0].mxu0
        %v614 = vadd.f32 %v529, %v613
        %v615 = vpop.f32.mrb[0].mxu0
        %v616 = vpop.f32.mrb[0].mxu0
        %v617 = vadd.f32 %v529, %v616
        %v618 = vpop.f32.mrb[0].mxu0
        %619 = vmatprep.mubr.bf16.mxu0 0
        %620 = vmatmul.mubr.bf16.gmra.mrb[0].mxu0 %v501
        %v621 = vpop.f32.mrb[0].mxu0
        %v622 = vadd.f32 %v529, %v621
        %v623 = vpop.f32.mrb[0].mxu0
        %v624 = vpop.f32.mrb[0].mxu0
        %v625 = vadd.f32 %v529, %v624
        %v626 = vpop.f32.mrb[0].mxu0
        %627 = vmatprep.mubr.bf16.mxu0 0
        %628 = vmatmul.mubr.bf16.gmra.mrb[0].mxu0 %v502
        %v629 = vpop.f32.mrb[0].mxu0
        %v630 = vadd.f32 %v529, %v629
        %v631 = vpop.f32.mrb[0].mxu0
        %v632 = vpop.f32.mrb[0].mxu0
        %v633 = vadd.f32 %v529, %v632
        %v634 = vpop.f32.mrb[0].mxu0
        %635 = vmatprep.mubr.bf16.mxu0 0
        %636 = vmatmul.mubr.bf16.gmra.mrb[0].mxu0 %v503
        %v637 = vpop.f32.mrb[0].mxu0
        %v638 = vadd.f32 %v529, %v637
        %v639 = vpop.f32.mrb[0].mxu0
        %v640 = vpop.f32.mrb[0].mxu0
        %v641 = vadd.f32 %v529, %v640
        %v642 = vpop.f32.mrb[0].mxu0
        %643 = vmatprep.mubr.bf16.mxu0 0
        %644 = vmatmul.mubr.bf16.gmra.mrb[0].mxu0 %v504
        %v645 = vpop.f32.mrb[0].mxu0
        %v646 = vadd.f32 %v529, %v645
        %v647 = vpop.f32.mrb[0].mxu0
        %v648 = vpop.f32.mrb[0].mxu0
        %v649 = vadd.f32 %v529, %v648
        %v650 = vpop.f32.mrb[0].mxu0
        %651 = vmatprep.mubr.bf16.mxu0 0
        %652 = vmatmul.mubr.bf16.gmra.mrb[0].mxu0 %v505
        %v653 = vpop.f32.mrb[0].mxu0
        %v654 = vadd.f32 %v529, %v653
        %v655 = vpop.f32.mrb[0].mxu0
        %v656 = vpop.f32.mrb[0].mxu0
        %v657 = vadd.f32 %v529, %v656
        %v658 = vpop.f32.mrb[0].mxu0
        %659 = vmatprep.mubr.bf16.mxu0 0
        %660 = vmatmul.mubr.bf16.gmra.mrb[0].mxu0 %v506
        %v661 = vpop.f32.mrb[0].mxu0
        %v662 = vadd.f32 %v529, %v661
        %v663 = vpop.f32.mrb[0].mxu0
        %v664 = vpop.f32.mrb[0].mxu0
        %v665 = vadd.f32 %v529, %v664
        %v666 = vpop.f32.mrb[0].mxu0
        %667 = vmatprep.mubr.bf16.mxu0 0
        %668 = vmatmul.mubr.bf16.gmra.mrb[0].mxu0 %v507
        %v669 = vpop.f32.mrb[0].mxu0
        %v670 = vadd.f32 %v529, %v669
        %v671 = vpop.f32.mrb[0].mxu0
        %v672 = vpop.f32.mrb[0].mxu0
        %v673 = vadd.f32 %v529, %v672
        %v674 = vpop.f32.mrb[0].mxu0
        %675 = vdwg.mxu0
        %v676 = vxor.u32 %v614, 2147483648
        %v677 = vxor.u32 %v617, 2147483648
        %v678 = vxor.u32 %v622, 2147483648
        %v679 = vxor.u32 %v625, 2147483648
        %v680 = vxor.u32 %v630, 2147483648
        %v681 = vxor.u32 %v633, 2147483648
        %v682 = vxor.u32 %v638, 2147483648
        %v683 = vxor.u32 %v641, 2147483648
        %v684 = vxor.u32 %v646, 2147483648
        %v685 = vxor.u32 %v649, 2147483648
        %v686 = vxor.u32 %v654, 2147483648
        %v687 = vxor.u32 %v657, 2147483648
        %v688 = vxor.u32 %v662, 2147483648
        %v689 = vxor.u32 %v665, 2147483648
        %v690 = vxor.u32 %v670, 2147483648
        %v691 = vxor.u32 %v673, 2147483648
        %v692 = vmul.f32 %v676, 1.442695
        %v693 = vpow.pop %v692
        %v694 = vmul.f32 %v677, 1.442695
        %v695 = vpow.pop %v694
        %v696 = vmul.f32 %v678, 1.442695
        %v697 = vpow.pop %v696
        %v698 = vmul.f32 %v679, 1.442695
        %v699 = vpow.pop %v698
        %v700 = vmul.f32 %v680, 1.442695
        %v701 = vpow.pop %v700
        %v702 = vmul.f32 %v681, 1.442695
        %v703 = vpow.pop %v702
        %v704 = vmul.f32 %v682, 1.442695
        %v705 = vpow.pop %v704
        %v706 = vmul.f32 %v683, 1.442695
        %v707 = vpow.pop %v706
        %v708 = vmul.f32 %v684, 1.442695
        %v709 = vpow.pop %v708
        %v710 = vmul.f32 %v685, 1.442695
        %v711 = vpow.pop %v710
        %v712 = vmul.f32 %v686, 1.442695
        %v713 = vpow.pop %v712
        %v714 = vmul.f32 %v687, 1.442695
        %v715 = vpow.pop %v714
        %v716 = vmul.f32 %v688, 1.442695
        %v717 = vpow.pop %v716
        %v718 = vmul.f32 %v689, 1.442695
        %v719 = vpow.pop %v718
        %v720 = vmul.f32 %v690, 1.442695
        %v721 = vpow.pop %v720
        %v722 = vmul.f32 %v691, 1.442695
        %v723 = vpow.pop %v722
        %v724 = vadd.f32 %v693, 1.0
        %v725 = vadd.f32 %v695, 1.0
        %v726 = vadd.f32 %v697, 1.0
        %v727 = vadd.f32 %v699, 1.0
        %v728 = vadd.f32 %v701, 1.0
        %v729 = vadd.f32 %v703, 1.0
        %v730 = vadd.f32 %v705, 1.0
        %v731 = vadd.f32 %v707, 1.0
        %v732 = vadd.f32 %v709, 1.0
        %v733 = vadd.f32 %v711, 1.0
        %v734 = vadd.f32 %v713, 1.0
        %v735 = vadd.f32 %v715, 1.0
        %v736 = vadd.f32 %v717, 1.0
        %v737 = vadd.f32 %v719, 1.0
        %v738 = vadd.f32 %v721, 1.0
        %v739 = vadd.f32 %v723, 1.0
        %v740 = vrcp.pop %v724
        %v741 = vmul.f32 1.0, %v740
        %v742 = vrcp.pop %v725
        %v743 = vmul.f32 1.0, %v742
        %v744 = vrcp.pop %v726
        %v745 = vmul.f32 1.0, %v744
        %v746 = vrcp.pop %v727
        %v747 = vmul.f32 1.0, %v746
        %v748 = vrcp.pop %v728
        %v749 = vmul.f32 1.0, %v748
        %v750 = vrcp.pop %v729
        %v751 = vmul.f32 1.0, %v750
        %v752 = vrcp.pop %v730
        %v753 = vmul.f32 1.0, %v752
        %v754 = vrcp.pop %v731
        %v755 = vmul.f32 1.0, %v754
        %v756 = vrcp.pop %v732
        %v757 = vmul.f32 1.0, %v756
        %v758 = vrcp.pop %v733
        %v759 = vmul.f32 1.0, %v758
        %v760 = vrcp.pop %v734
        %v761 = vmul.f32 1.0, %v760
        %v762 = vrcp.pop %v735
        %v763 = vmul.f32 1.0, %v762
        %v764 = vrcp.pop %v736
        %v765 = vmul.f32 1.0, %v764
        %v766 = vrcp.pop %v737
        %v767 = vmul.f32 1.0, %v766
        %v768 = vrcp.pop %v738
        %v769 = vmul.f32 1.0, %v768
        %v770 = vrcp.pop %v739
        %v771 = vmul.f32 1.0, %v770
        %772 = vadd.xlane.f32.xlu0 %v741
        %v773 = vpop.xlane.xlu0 %772
        %774 = vadd.xlane.f32.xlu0 %v743
        %v775 = vpop.xlane.xlu0 %774
        %776 = vadd.xlane.f32.xlu0 %v745
        %v777 = vpop.xlane.xlu0 %776
        %778 = vadd.xlane.f32.xlu0 %v747
        %v779 = vpop.xlane.xlu0 %778
        %780 = vadd.xlane.f32.xlu0 %v749
        %v781 = vpop.xlane.xlu0 %780
        %782 = vadd.xlane.f32.xlu0 %v751
        %v783 = vpop.xlane.xlu0 %782
        %784 = vadd.xlane.f32.xlu0 %v753
        %v785 = vpop.xlane.xlu0 %784
        %786 = vadd.xlane.f32.xlu0 %v755
        %v787 = vpop.xlane.xlu0 %786
        %788 = vadd.xlane.f32.xlu0 %v757
        %v789 = vpop.xlane.xlu0 %788
        %790 = vadd.xlane.f32.xlu0 %v759
        %v791 = vpop.xlane.xlu0 %790
        %792 = vadd.xlane.f32.xlu0 %v761
        %v793 = vpop.xlane.xlu0 %792
        %794 = vadd.xlane.f32.xlu0 %v763
        %v795 = vpop.xlane.xlu0 %794
        %796 = vadd.xlane.f32.xlu0 %v765
        %v797 = vpop.xlane.xlu0 %796
        %798 = vadd.xlane.f32.xlu0 %v767
        %v799 = vpop.xlane.xlu0 %798
        %800 = vadd.xlane.f32.xlu0 %v769
        %v801 = vpop.xlane.xlu0 %800
        %802 = vadd.xlane.f32.xlu0 %v771
        %v803 = vpop.xlane.xlu0 %802
        %v804 = vmul.f32 %v773, %v311
        %v805 = vmul.f32 %v775, %v311
        %v806 = vmul.f32 %v777, %v311
        %v807 = vmul.f32 %v779, %v311
        %v808 = vmul.f32 %v781, %v311
        %v809 = vmul.f32 %v783, %v311
        %v810 = vmul.f32 %v785, %v311
        %v811 = vmul.f32 %v787, %v311
        %v812 = vmul.f32 %v789, %v311
        %v813 = vmul.f32 %v791, %v311
        %v814 = vmul.f32 %v793, %v311
        %v815 = vmul.f32 %v795, %v311
        %v816 = vmul.f32 %v797, %v311
        %v817 = vmul.f32 %v799, %v311
        %v818 = vmul.f32 %v801, %v311
        %v819 = vmul.f32 %v803, %v311
        %v820 = vsub.f32 %v741, %v804
        %v821 = vsub.f32 %v743, %v805
        %v822 = vsub.f32 %v745, %v806
        %v823 = vsub.f32 %v747, %v807
        %v824 = vsub.f32 %v749, %v808
        %v825 = vsub.f32 %v751, %v809
        %v826 = vsub.f32 %v753, %v810
        %v827 = vsub.f32 %v755, %v811
        %v828 = vsub.f32 %v757, %v812
        %v829 = vsub.f32 %v759, %v813
        %v830 = vsub.f32 %v761, %v814
        %v831 = vsub.f32 %v763, %v815
        %v832 = vsub.f32 %v765, %v816
        %v833 = vsub.f32 %v767, %v817
        %v834 = vsub.f32 %v769, %v818
        %v835 = vsub.f32 %v771, %v819
        %v836 = vmul.f32 %v820, %v820
        %v837 = vmul.f32 %v821, %v821
        %v838 = vmul.f32 %v822, %v822
        %v839 = vmul.f32 %v823, %v823
        %v840 = vmul.f32 %v824, %v824
        %v841 = vmul.f32 %v825, %v825
        %v842 = vmul.f32 %v826, %v826
        %v843 = vmul.f32 %v827, %v827
        %v844 = vmul.f32 %v828, %v828
        %v845 = vmul.f32 %v829, %v829
        %v846 = vmul.f32 %v830, %v830
        %v847 = vmul.f32 %v831, %v831
        %v848 = vmul.f32 %v832, %v832
        %v849 = vmul.f32 %v833, %v833
        %v850 = vmul.f32 %v834, %v834
        %v851 = vmul.f32 %v835, %v835
        %852 = vadd.xlane.f32.xlu0 %v836
        %v853 = vpop.xlane.xlu0 %852
        %854 = vadd.xlane.f32.xlu0 %v837
        %v855 = vpop.xlane.xlu0 %854
        %856 = vadd.xlane.f32.xlu0 %v838
        %v857 = vpop.xlane.xlu0 %856
        %858 = vadd.xlane.f32.xlu0 %v839
        %v859 = vpop.xlane.xlu0 %858
        %860 = vadd.xlane.f32.xlu0 %v840
        %v861 = vpop.xlane.xlu0 %860
        %862 = vadd.xlane.f32.xlu0 %v841
        %v863 = vpop.xlane.xlu0 %862
        %864 = vadd.xlane.f32.xlu0 %v842
        %v865 = vpop.xlane.xlu0 %864
        %866 = vadd.xlane.f32.xlu0 %v843
        %v867 = vpop.xlane.xlu0 %866
        %868 = vadd.xlane.f32.xlu0 %v844
        %v869 = vpop.xlane.xlu0 %868
        %870 = vadd.xlane.f32.xlu0 %v845
        %v871 = vpop.xlane.xlu0 %870
        %872 = vadd.xlane.f32.xlu0 %v846
        %v873 = vpop.xlane.xlu0 %872
        %874 = vadd.xlane.f32.xlu0 %v847
        %v875 = vpop.xlane.xlu0 %874
        %876 = vadd.xlane.f32.xlu0 %v848
        %v877 = vpop.xlane.xlu0 %876
        %878 = vadd.xlane.f32.xlu0 %v849
        %v879 = vpop.xlane.xlu0 %878
        %880 = vadd.xlane.f32.xlu0 %v850
        %v881 = vpop.xlane.xlu0 %880
        %882 = vadd.xlane.f32.xlu0 %v851
        %v883 = vpop.xlane.xlu0 %882
        %v884 = vmul.f32 %v853, %v311
        %v885 = vmul.f32 %v855, %v311
        %v886 = vmul.f32 %v857, %v311
        %v887 = vmul.f32 %v859, %v311
        %v888 = vmul.f32 %v861, %v311
        %v889 = vmul.f32 %v863, %v311
        %v890 = vmul.f32 %v865, %v311
        %v891 = vmul.f32 %v867, %v311
        %v892 = vmul.f32 %v869, %v311
        %v893 = vmul.f32 %v871, %v311
        %v894 = vmul.f32 %v873, %v311
        %v895 = vmul.f32 %v875, %v311
        %v896 = vmul.f32 %v877, %v311
        %v897 = vmul.f32 %v879, %v311
        %v898 = vmul.f32 %v881, %v311
        %v899 = vmul.f32 %v883, %v311
        %v900 = vadd.f32 %v884, 1e-05
        %v901 = vadd.f32 %v885, 1e-05
        %v902 = vadd.f32 %v886, 1e-05
        %v903 = vadd.f32 %v887, 1e-05
        %v904 = vadd.f32 %v888, 1e-05
        %v905 = vadd.f32 %v889, 1e-05
        %v906 = vadd.f32 %v890, 1e-05
        %v907 = vadd.f32 %v891, 1e-05
        %v908 = vadd.f32 %v892, 1e-05
        %v909 = vadd.f32 %v893, 1e-05
        %v910 = vadd.f32 %v894, 1e-05
        %v911 = vadd.f32 %v895, 1e-05
        %v912 = vadd.f32 %v896, 1e-05
        %v913 = vadd.f32 %v897, 1e-05
        %v914 = vadd.f32 %v898, 1e-05
        %v915 = vadd.f32 %v899, 1e-05
        %v916 = vrsqrt.pop %v900
        %v917 = vrsqrt.pop %v901
        %v918 = vrsqrt.pop %v902
        %v919 = vrsqrt.pop %v903
        %v920 = vrsqrt.pop %v904
        %v921 = vrsqrt.pop %v905
        %v922 = vrsqrt.pop %v906
        %v923 = vrsqrt.pop %v907
        %v924 = vrsqrt.pop %v908
        %v925 = vrsqrt.pop %v909
        %v926 = vrsqrt.pop %v910
        %v927 = vrsqrt.pop %v911
        %v928 = vrsqrt.pop %v912
        %v929 = vrsqrt.pop %v913
        %v930 = vrsqrt.pop %v914
        %v931 = vrsqrt.pop %v915
        %v932 = vmul.f32 %v916, %v444
        %v933 = vmul.f32 %v917, %v444
        %v934 = vmul.f32 %v918, %v444
        %v935 = vmul.f32 %v919, %v444
        %v936 = vmul.f32 %v920, %v444
        %v937 = vmul.f32 %v921, %v444
        %v938 = vmul.f32 %v922, %v444
        %v939 = vmul.f32 %v923, %v444
        %v940 = vmul.f32 %v924, %v444
        %v941 = vmul.f32 %v925, %v444
        %v942 = vmul.f32 %v926, %v444
        %v943 = vmul.f32 %v927, %v444
        %v944 = vmul.f32 %v928, %v444
        %v945 = vmul.f32 %v929, %v444
        %v946 = vmul.f32 %v930, %v444
        %v947 = vmul.f32 %v931, %v444
        %v948 = vmul.f32 %v820, %v932
        %v949 = vmul.f32 %v821, %v933
        %v950 = vmul.f32 %v822, %v934
        %v951 = vmul.f32 %v823, %v935
        %v952 = vmul.f32 %v824, %v936
        %v953 = vmul.f32 %v825, %v937
        %v954 = vmul.f32 %v826, %v938
        %v955 = vmul.f32 %v827, %v939
        %v956 = vmul.f32 %v828, %v940
        %v957 = vmul.f32 %v829, %v941
        %v958 = vmul.f32 %v830, %v942
        %v959 = vmul.f32 %v831, %v943
        %v960 = vmul.f32 %v832, %v944
        %v961 = vmul.f32 %v833, %v945
        %v962 = vmul.f32 %v834, %v946
        %v963 = vmul.f32 %v835, %v947
        %v964 = vadd.f32 %v948, %v482
        %v965 = vadd.f32 %v949, %v482
        %v966 = vadd.f32 %v950, %v482
        %v967 = vadd.f32 %v951, %v482
        %v968 = vadd.f32 %v952, %v482
        %v969 = vadd.f32 %v953, %v482
        %v970 = vadd.f32 %v954, %v482
        %v971 = vadd.f32 %v955, %v482
        %v972 = vadd.f32 %v956, %v482
        %v973 = vadd.f32 %v957, %v482
        %v974 = vadd.f32 %v958, %v482
        %v975 = vadd.f32 %v959, %v482
        %v976 = vadd.f32 %v960, %v482
        %v977 = vadd.f32 %v961, %v482
        %v978 = vadd.f32 %v962, %v482
        %v979 = vadd.f32 %v963, %v482
        %980 = vst [vmem:[%s257] sm:$0xff] %v964
        %981 = vst [vmem:[%s257 + $0x8] sm:$0xff] %v965
        %982 = vst [vmem:[%s257 + $0x10] sm:$0xff] %v966
        %983 = vst [vmem:[%s257 + $0x18] sm:$0xff] %v967
        %984 = vst [vmem:[%s257 + $0x20] sm:$0xff] %v968
        %985 = vst [vmem:[%s257 + $0x28] sm:$0xff] %v969
        %986 = vst [vmem:[%s257 + $0x30] sm:$0xff] %v970
        %987 = vst [vmem:[%s257 + $0x38] sm:$0xff] %v971
        %988 = vst [vmem:[%s257 + $0x40] sm:$0xff] %v972
        %989 = vst [vmem:[%s257 + $0x48] sm:$0xff] %v973
        %990 = vst [vmem:[%s257 + $0x50] sm:$0xff] %v974
        %991 = vst [vmem:[%s257 + $0x58] sm:$0xff] %v975
        %992 = vst [vmem:[%s257 + $0x60] sm:$0xff] %v976
        %993 = vst [vmem:[%s257 + $0x68] sm:$0xff] %v977
        %994 = vst [vmem:[%s257 + $0x70] sm:$0xff] %v978
        %995 = vst [vmem:[%s257 + $0x78] sm:$0xff] %v979
        %s996 = sand.u32 %s141, 1
        %s997 = scalar_lea.sflag [#allocation4], %s996
        %s998 = sand.u32 %s141, 1
        %s999 = smul.addr %s998, 128
        %s1000 = scalar_lea.vmem [#allocation7], %s999
        // Predicated region
        $region49: #{tpu_custom_call.1} parent=39 // pred_check
          %p1001 = pneg %p151
        $region50: #{tpu_custom_call.1} parent=39 // pred_check_branch
          %1003 = sbr.rel (%p1001) target = $region52
        $region51: #{tpu_custom_call.1} parent=39 // pred_region
          %s1004 = smul.u32 16, %s23
          %s1006 = ssub.s32 2048, 2048
          %1007 = vsyncadd %s997, %s1006
          %s1008 = smul.addr %s1004, 128
          %s1009 = scalar_lea.hbm %s5, %s1008
          %s1010 = sshll.u32 %s1000, 4
          %s1011 = int_to_ptr.vmem [resolvable:$true] %s1010
          %1016 = dma.vmem_to_hbm [thread:$0]  %s1011, 2048, %s1009, %s997, 128, 128, 8
        $region52: #{tpu_custom_call.1} parent=39 // pred_fallthru
          _
      $region40: #{tpu_custom_call.1} parent=5 // pred_fallthru
        _
      %p1017 = scmp.le.s32.totalorder 2, %s18
      // Predicated region
      $region53: #{tpu_custom_call.1} parent=5 // pred_check
        %p1018 = pneg %p1017
      $region54: #{tpu_custom_call.1} parent=5 // pred_check_branch
        %1020 = sbr.rel (%p1018) target = $region56
      $region55: #{tpu_custom_call.1} parent=5 // pred_region
        %s1021 = ssub.s32 %s18, 2
        // Predicated region
        $region57: #{tpu_custom_call.1} parent=55 // pred_check
          %p1022 = pneg %p157
        $region58: #{tpu_custom_call.1} parent=55 // pred_check_branch
          %1024 = sbr.rel (%p1022) target = $region60
        $region59: #{tpu_custom_call.1} parent=55 // pred_region
          %s1025 = sand.u32 %s142, 1
          %s1026 = scalar_lea.sflag [#allocation4], %s1025
          %s1027 = sand.u32 %s142, 1
          %s1028 = smul.addr %s1027, 128
          %s1029 = scalar_lea.vmem [#allocation7], %s1028
          %1030 = dma.done %s1026, 2048
        $region60: #{tpu_custom_call.1} parent=55 // pred_fallthru
          _
      $region56: #{tpu_custom_call.1} parent=5 // pred_fallthru
        _
    $region6: #{tpu_custom_call.1} parent=1 // loop_footer
      %s22 = sadd.s32 1, %s18
    $region7: #{tpu_custom_call.1} parent=1 // loop_footer_branch
      %17 = sbr.rel target = $region3
    $region8: #{tpu_custom_call.1} parent=1 // loop_exit
      _
    %1031 = vsyncpa [#allocation3], 1
    %s1032 = scalar_lea.sflag [#allocation3], 1
    %1033 = vsyncpa %s1032, 1
    %1034 = vsyncpa [#allocation6], 1
    %1035 = vsyncpa [#allocation4], 1
    %s1036 = scalar_lea.sflag [#allocation4], 1
    %1037 = vsyncpa %s1036, 1

</llo_original>
